<compile_context>
chip_gen: v6e
topology: v6e:2x2x1
jax: 0.10.0
libtpu: 0.0.40
codegen_flags: <defaults>
</compile_context>

<pallas_src>
import functools

import jax
import jax.numpy as jnp
from jax.experimental import pallas as pl
from jax.experimental.pallas import tpu as pltpu

LATENT_CH = 4     # SD latent channels
PATCH = 4         # stand-in downsample factor for encode_first_stage
RATE = 10000
MODE = 2

_LANES = 128
_SUBLANES = 8


def _cdiv(a, b):
    return -(-a // b)


def _round_up(a, b):
    return _cdiv(a, b) * b


# ---------------------------------------------------------------------------
# Fused kernel for one M tile:  z = W^T · dP_chunk -> square -> per-lane acc
#   wT_ref : (Np, Kp)      bf16  -- encoder weight (transposed), grid-resident
#   dpT_ref: (Kp, tm)      bf16  -- im2col'd image diff, lane-dense in M
#   o_ref  : (1, Np, 128)  f32   -- per-lane partial sums for this M tile
# ---------------------------------------------------------------------------
def _textural_kernel(wT_ref, dpT_ref, o_ref, *, tm, chunk):
    w = wT_ref[...]                                            # hoisted load
    acc = jnp.zeros((o_ref.shape[1], _LANES), jnp.float32)
    # Static chunked accumulation: keeps live vregs bounded (z is only
    # (Np, chunk) f32 per step) while the grid itself stays at 2-4 steps.
    # All slices are static -> free ref views, no dynamic-slice lowering risk.
    for c0 in range(0, tm, chunk):
        z = jnp.dot(w, dpT_ref[:, c0:c0 + chunk],
                    preferred_element_type=jnp.float32)        # MXU (Np,chunk)
        zz = z * z                                             # VPU
        # Per-lane accumulation only (VPU adds at 128-lane granularity); the
        # single cross-lane reduce happens once in JAX on the tiny partials.
        for t in range(chunk // _LANES):
            acc = acc + zz[:, t * _LANES:(t + 1) * _LANES]
    o_ref[...] = acc[None]                                     # (1, Np, 128)


def _choose_tiles(M, tm_max, chunk):
    """Pick (chunk, tm, grid) so that tm <= tm_max, the grid is >= 2 and even
    when possible (balanced v7x megacore split), and HBM-streamed zero padding
    is minimal (at most a couple of chunks)."""
    tm_max = max(_LANES, (tm_max // _LANES) * _LANES)
    chunk = max(_LANES, (min(chunk, tm_max) // _LANES) * _LANES)
    n_chunks = _cdiv(M, chunk)
    max_cpt = max(tm_max // chunk, 1)          # chunks per tile upper bound
    best_key, best_cpt = None, 1
    for cpt in range(max_cpt, 0, -1):
        g = _cdiv(n_chunks, cpt)
        pad_chunks = g * cpt - n_chunks
        # prefer: even grid with >= 2 steps, then least zero padding,
        # then fewest grid steps (per-step overhead ~0.35us).
        key = (0 if (g >= 2 and g % 2 == 0) else 1, pad_chunks, g)
        if best_key is None or key < best_key:
            best_key, best_cpt = key, cpt
    g = _cdiv(n_chunks, best_cpt)
    return chunk, best_cpt * chunk, g


def textural_loss_fused(x, target_info, w_enc, *, tm_max=8192, chunk=512):
    """sum((encode(x) - encode(target_info))**2) with one Pallas kernel.

    Exact fusion by linearity of the stand-in encoder: zx - zy = encode(x - y),
    so only one projection runs and zx / zy never touch HBM.
    # TODO(synk): with the real (nonlinear) SD VAE encoder this diff-before-
    # encode trick does not apply; zx/zy would come from separate encoder
    # kernels and only the fused MSE-sum reduction stays valid.
    """
    B, C, H, W = x.shape
    assert H % PATCH == 0 and W % PATCH == 0
    Hl, Wl = H // PATCH, W // PATCH
    K = C * PATCH * PATCH
    M = B * Hl * Wl

    # Diff + bf16 cast FIRST (fused elementwise in XLA), so the unavoidable
    # im2col relayout moves 2-byte instead of 4-byte data.
    # TODO(synk): best case would stream x / target_info once in natural layout
    # and do subtract + patch relayout inside the kernel; the in-kernel patch
    # transpose is the blocker, so we keep one host-side 2-byte relayout and
    # hint allow_input_fusion so XLA may fold it into the pallas-call inputs.
    d = (x - target_info).astype(jnp.bfloat16)
    dpT = d.reshape(B, C, Hl, PATCH, Wl, PATCH)
    dpT = dpT.transpose(1, 3, 5, 0, 2, 4).reshape(K, M)     # (K, M), lane-dense M
    wT = w_enc.T.astype(jnp.bfloat16)                       # (LATENT_CH, K)

    chunk, tm, g = _choose_tiles(M, tm_max, chunk)
    Mp = g * tm
    Np = _round_up(LATENT_CH, _SUBLANES)
    Kp = _round_up(K, _SUBLANES)
    # Zero padding is exact for a sum of squares (padded rows / cols add 0).
    wT = jnp.pad(wT, ((0, Np - LATENT_CH), (0, Kp - K)))
    dpT = jnp.pad(dpT, ((0, Kp - K), (0, Mp - M)))

    partials = pl.pallas_call(
        functools.partial(_textural_kernel, tm=tm, chunk=chunk),
        out_shape=jax.ShapeDtypeStruct((g, Np, _LANES), jnp.float32),
        grid=(g,),
        in_specs=[
            pl.BlockSpec((Np, Kp), lambda i: (0, 0)),   # weight stays resident
            pl.BlockSpec((Kp, tm), lambda i: (0, i)),   # auto-pipelined M tiles
        ],
        out_specs=pl.BlockSpec((1, Np, _LANES), lambda i: (i, 0, 0)),
        compiler_params=pltpu.CompilerParams(
            # Independent per-tile partials -> both TensorCores on v7x (grid is
            # kept even where possible), harmless no-op on v5e/v6e.
            dimension_semantics=("parallel",),
            # Hint only: let XLA fuse the diff/cast/relayout producer into the
            # pallas-call input stream when it can (ignored otherwise).
            allow_input_fusion=[False, True],
            # No explicit vmem_limit_bytes: footprint is < 2 MiB even at
            # tm=16384 (48 x tm bf16, double-buffered), well inside every
            # generation's default scoped-VMEM limit (16/32 MiB).
        ),
    )(wT, dpT)
    return jnp.sum(partials)


def target_model_forward(x, target_info, w_enc, mode=MODE, rate=RATE,
                         components=False, tm_max=8192, chunk=512):
    if target_info is not None:
        textural_loss = textural_loss_fused(x, target_info, w_enc,
                                            tm_max=tm_max, chunk=chunk)
    else:
        textural_loss = jnp.float32(0.0)

    # TODO(synk): loss_semantic needs the external Stable Diffusion UNet + CLIP
    # text conditioning (self.model(z, c)[0]) and torchvision RandomCrop
    # preprocessing; with no wrapped model it takes the model-is-None value 0.0.
    loss_semantic = jnp.float32(0.0)

    if components:
        return textural_loss, loss_semantic
    if mode == 0:
        return -loss_semantic
    elif mode == 1:
        return textural_loss
    return textural_loss - loss_semantic * jnp.float32(rate)


if __name__ == "__main__":
    key = jax.random.PRNGKey(0)
    k1, k2, k3 = jax.random.split(key, 3)

    B, C, H, W = 2, 3, 64, 64                  # small SD-style RGB inputs
    x = jax.random.normal(k1, (B, C, H, W), jnp.float32)
    target_info = jax.random.normal(k2, (B, C, H, W), jnp.float32)

    # deterministic stand-in first-stage-encoder weights: [C*PATCH*PATCH, LATENT_CH]
    w_enc = 0.05 * jax.random.normal(
        k3, (C * PATCH * PATCH, LATENT_CH), jnp.float32)

    # pure-JAX reference (same bf16-rounded operands, f32 accumulation)
    Hl, Wl = H // PATCH, W // PATCH
    d = (x - target_info).astype(jnp.bfloat16).astype(jnp.float32)
    dp = d.reshape(B, C, Hl, PATCH, Wl, PATCH).transpose(0, 2, 4, 1, 3, 5)
    dp = dp.reshape(B * Hl * Wl, C * PATCH * PATCH)
    z_ref = dp @ w_enc.astype(jnp.bfloat16).astype(jnp.float32)
    ref = jnp.sum(z_ref * z_ref)

    # Small tiles: exercises the 2-step "parallel" grid + multi-chunk MXU loop.
    out_small = target_model_forward(x, target_info, w_enc,
                                     tm_max=256, chunk=128)
    # Default tiles: single big lane-dense block (production configuration).
    out_default = target_model_forward(x, target_info, w_enc)
    out_small, out_default = jax.block_until_ready((out_small, out_default))

    assert jnp.allclose(out_small, ref, rtol=1e-2, atol=1e-2), (
        float(out_small), float(ref))
    assert jnp.allclose(out_default, ref, rtol=1e-2, atol=1e-2), (
        float(out_default), float(ref))

    print("KERNEL_OK")
</pallas_src>

<mosaic_0001>
module attributes {stable_mosaic.version = 11 : i64} {
  func.func @_textural_kernel(%arg0: i32, %arg1: memref<8x48xbf16, #tpu.memory_space<vmem>>, %arg2: memref<48x256xbf16, #tpu.memory_space<vmem>>, %arg3: memref<1x8x128xf32, #tpu.memory_space<vmem>>) attributes {dimension_semantics = [#tpu.dimension_semantics<parallel>], iteration_bounds = array<i64: 2>, scalar_prefetch = 0 : i64, scratch_operands = 0 : i64, tpu.core_type = #tpu.core_type<tc>, window_params = [{pipeline_mode = #tpu.pipeline_mode<synchronous>, transform_indices = @transform_0, window_bounds = array<i64: 8, 48>}, {transform_indices = @transform_1, window_bounds = array<i64: 48, 256>}, {transform_indices = @transform_2, window_bounds = array<i64: 1, 8, 128>}]} {
    %c0 = arith.constant 0 : index
    %c0_0 = arith.constant 0 : index
    %0 = vector.load %arg1[%c0, %c0_0] : memref<8x48xbf16, #tpu.memory_space<vmem>>, vector<8x48xbf16>
    %cst = arith.constant 0.000000e+00 : f32
    %1 = vector.broadcast %cst : f32 to vector<8x128xf32>
    %c0_1 = arith.constant 0 : index
    %c0_2 = arith.constant 0 : index
    %2 = vector.load %arg2[%c0_1, %c0_2] : memref<48x256xbf16, #tpu.memory_space<vmem>>, vector<48x128xbf16>
    %cst_3 = arith.constant dense<0.000000e+00> : vector<8x128xf32>
    %3 = tpu.matmul %0, %2, %cst_3 {dimension_numbers = #tpu.dot_dimension_numbers<[1], [0], [0], [1], [0, 0, 1, 1], [], []>} : vector<8x48xbf16>, vector<48x128xbf16>, vector<8x128xf32> -> vector<8x128xf32>
    %4 = arith.mulf %3, %3 : vector<8x128xf32>
    %5 = arith.addf %1, %4 : vector<8x128xf32>
    %c0_4 = arith.constant 0 : index
    %c128 = arith.constant 128 : index
    %6 = vector.load %arg2[%c0_4, %c128] : memref<48x256xbf16, #tpu.memory_space<vmem>>, vector<48x128xbf16>
    %cst_5 = arith.constant dense<0.000000e+00> : vector<8x128xf32>
    %7 = tpu.matmul %0, %6, %cst_5 {dimension_numbers = #tpu.dot_dimension_numbers<[1], [0], [0], [1], [0, 0, 1, 1], [], []>} : vector<8x48xbf16>, vector<48x128xbf16>, vector<8x128xf32> -> vector<8x128xf32>
    %8 = arith.mulf %7, %7 : vector<8x128xf32>
    %9 = arith.addf %5, %8 : vector<8x128xf32>
    %10 = vector.shape_cast %9 : vector<8x128xf32> to vector<1x8x128xf32>
    %c0_6 = arith.constant 0 : index
    %c0_7 = arith.constant 0 : index
    %c0_8 = arith.constant 0 : index
    %11 = vector.load %arg3[%c0_6, %c0_7, %c0_8] : memref<1x8x128xf32, #tpu.memory_space<vmem>>, vector<1x8x128xf32>
    tpu.vector_store %arg3[%c0_6, %c0_7, %c0_8], %10 {strides = array<i32>} : memref<1x8x128xf32, #tpu.memory_space<vmem>>, vector<1x8x128xf32>,
    return
  }
  func.func @transform_0(%arg0: i32) -> (i32, i32) {
    %c0_i32 = arith.constant 0 : i32
    %c0_i32_0 = arith.constant 0 : i32
    %c0_i32_1 = arith.constant 0 : i32
    return %c0_i32, %c0_i32_0 : i32, i32
  }
  func.func @transform_1(%arg0: i32) -> (i32, i32) {
    %c0_i32 = arith.constant 0 : i32
    %c0_i32_0 = arith.constant 0 : i32
    return %c0_i32, %arg0 : i32, i32
  }
  func.func @transform_2(%arg0: i32) -> (i32, i32, i32) {
    %c0_i32 = arith.constant 0 : i32
    %c0_i32_0 = arith.constant 0 : i32
    %c0_i32_1 = arith.constant 0 : i32
    return %arg0, %c0_i32, %c0_i32_0 : i32, i32, i32
  }
}

</mosaic_0001>

<llo_original>
// kernel: tpu_custom_call.1
$region0: #{tpu_custom_call.1}
  #allocation0 [shape = 'u32[]', space=smem, size = 0x4, offset = 0x4, fixed_abs, tag = 'smem constant byte address 0x4 - core index']
  #allocation1 [shape = 'u32[144,128]{1,0:T(1,128)}', space=vmem, size = 0x12000, scoped, tag = 'internal scratch']
  %s0 = inlined_call_operand.hbm [shape: bf16[8,48], index: 0, kind: input, shape index: {}]
  %s1 = inlined_call_operand.hbm [shape: bf16[48,512], index: 1, kind: input, shape index: {}]
  %s2 = inlined_call_operand.hbm [shape: f32[2,8,128], index: 2, kind: output, shape index: {}]
  %s3 = sld [smem:[#allocation0]]
  $region49: #{tpu_custom_call.1} parent=0
    _
  %s5 = ssub.s32 1, %s3
  %s6 = scalar_select 0, %s5, %s3
  $region1: #{tpu_custom_call.1} parent=0
    #allocation2 [shape = 'u8[2048]{0}', space=vmem, size = 0x800, scoped, tag = 'input window, operand 0, single buffered']
    #allocation3 [shape = 's32[2]{0}', space=sflag, size = 0x8, scoped, tag = 'scoped memory for tpu_custom_call.1']
    #allocation4 [shape = 's32[2]{0}', space=sflag, size = 0x8, scoped, tag = 'scoped memory for tpu_custom_call.1']
    #allocation5 [shape = 'u8[49152]{0}', space=vmem, size = 0xc000, scoped, tag = 'input window, operand 1']
    #allocation6 [shape = 's32[2]{0}', space=sflag, size = 0x8, scoped, tag = 'scoped memory for tpu_custom_call.1']
    #allocation7 [shape = 'u8[8192]{0}', space=vmem, size = 0x2000, scoped, tag = 'output window, operand 0']
    %7 = vsyncpa [#allocation3], 0
    %8 = vsyncpa [#allocation6], 0
    %s9 = scalar_lea.sflag [#allocation6], 1
    %10 = vsyncpa %s9, 0
    %11 = vsyncpa [#allocation4], 0
    %s12 = scalar_lea.sflag [#allocation4], 1
    %13 = vsyncpa %s12, 0
    loop: start=0, step=1, limit=4
    $region2: #{tpu_custom_call.1} parent=1 // loop_pre_header
      _
    $region3: #{tpu_custom_call.1} parent=1 // loop_header
      %s15 = sphi 0, %s19
      %p16 = scmp.ge.s32.totalorder %s15, 4
      %s23 = sphi 0, %s23
      %s25 = sphi 0, %s23
      %s26 = sphi 0, %s25
      %s40 = sphi 0, %s26
      %s46 = sphi 0, %s48
      %s49 = sphi 0, %s46
      %s50 = sphi 0, %s49
      %s66 = sphi 0, %s50
      %s72 = sphi 0, %s74
      %s75 = sphi 0, %s72
      %s76 = sphi 0, %s75
      %s92 = sphi 0, %s76
    $region4: #{tpu_custom_call.1} parent=1 // loop_header_branch
      %18 = sbr.rel (%p16) target = $region8
    $region5: #{tpu_custom_call.1} parent=1 // loop_body
      %s20 = ssub.s32 %s15, 1
      %s21 = ssub.s32 %s15, 2
      %s22 = sadd.s32 %s15, 1
      %s24 = sadd.s32 %s23, 1
      %p27 = scmp.eq.s32.totalorder %s15, 1
      %p28 = scmp.ne.s32.totalorder %s23, %s25
      %p29 = scmp.eq.s32.totalorder %s15, 0
      %p30 = por %p28, %p29
      %p31 = scmp.ne.s32.totalorder %s23, %s25
      %p32 = scmp.eq.s32.totalorder %s20, 1
      %p33 = por %p31, %p32
      %p34 = scmp.ne.s32.totalorder %s25, %s26
      %p35 = scmp.eq.s32.totalorder %s20, 0
      %p36 = por %p34, %p35
      %p37 = scmp.ne.s32.totalorder %s25, %s26
      %p38 = scmp.eq.s32.totalorder %s21, 1
      %p39 = por %p37, %p38
      %p41 = scmp.ne.s32.totalorder %s26, %s40
      %p42 = scmp.eq.s32.totalorder %s21, 0
      %p43 = por %p41, %p42
      %s44 = ssub.s32 %s15, %s22
      %p45 = scmp.eq.s32.totalorder %s44, 0
      %s47 = sadd.s32 %s46, 1
      %s48 = scalar_select %p45, %s46, %s47
      %p51 = pneg %p45
      %p52 = scmp.eq.s32.totalorder %s15, 1
      %p53 = por %p51, %p52
      %p54 = scmp.ne.s32.totalorder %s46, %s49
      %p55 = scmp.eq.s32.totalorder %s15, 0
      %p56 = por %p54, %p55
      %p57 = scmp.ne.s32.totalorder %s46, %s49
      %p58 = scmp.eq.s32.totalorder %s20, 1
      %p59 = por %p57, %p58
      %p60 = scmp.ne.s32.totalorder %s49, %s50
      %p61 = scmp.eq.s32.totalorder %s20, 0
      %p62 = por %p60, %p61
      %p63 = scmp.ne.s32.totalorder %s49, %s50
      %p64 = scmp.eq.s32.totalorder %s21, 1
      %p65 = por %p63, %p64
      %p67 = scmp.ne.s32.totalorder %s50, %s66
      %p68 = scmp.eq.s32.totalorder %s21, 0
      %p69 = por %p67, %p68
      %s70 = ssub.s32 %s15, %s22
      %p71 = scmp.eq.s32.totalorder %s70, 0
      %s73 = sadd.s32 %s72, 1
      %s74 = scalar_select %p71, %s72, %s73
      %p77 = pneg %p71
      %p78 = scmp.eq.s32.totalorder %s15, 1
      %p79 = por %p77, %p78
      %p80 = scmp.ne.s32.totalorder %s72, %s75
      %p81 = scmp.eq.s32.totalorder %s15, 0
      %p82 = por %p80, %p81
      %p83 = scmp.ne.s32.totalorder %s72, %s75
      %p84 = scmp.eq.s32.totalorder %s20, 1
      %p85 = por %p83, %p84
      %p86 = scmp.ne.s32.totalorder %s75, %s76
      %p87 = scmp.eq.s32.totalorder %s20, 0
      %p88 = por %p86, %p87
      %p89 = scmp.ne.s32.totalorder %s75, %s76
      %p90 = scmp.eq.s32.totalorder %s21, 1
      %p91 = por %p89, %p90
      %p93 = scmp.ne.s32.totalorder %s76, %s92
      %p94 = scmp.eq.s32.totalorder %s21, 0
      %p95 = por %p93, %p94
      %p96 = scmp.le.s32.totalorder 1, %s15
      %p97 = scmp.lt.s32.totalorder %s15, 3
      %p98 = pnand %p96, %p97
      %p99 = pneg %p98
      // Predicated region
      $region9: #{tpu_custom_call.1} parent=5 // pred_check
        _
      $region10: #{tpu_custom_call.1} parent=5 // pred_check_branch
        %101 = sbr.rel (%p98) target = $region12
      $region11: #{tpu_custom_call.1} parent=5 // pred_region
        %s102 = ssub.s32 %s15, 1
        // Predicated region
        $region13: #{tpu_custom_call.1} parent=11 // pred_check
          %p103 = pneg %p36
        $region14: #{tpu_custom_call.1} parent=11 // pred_check_branch
          %105 = sbr.rel (%p103) target = $region16
        $region15: #{tpu_custom_call.1} parent=11 // pred_region
          %s107 = ssub.s32 64, 64
          %108 = vsyncadd [#allocation3], %s107
          %s110 = sshll.u32 [#allocation2], 4
          %s111 = int_to_ptr.vmem [resolvable:$true] %s110
          %113 = dma.hbm_to_vmem [thread:$0]  %s0, 64, %s111, [#allocation3]
        $region16: #{tpu_custom_call.1} parent=11 // pred_fallthru
          _
      $region12: #{tpu_custom_call.1} parent=5 // pred_fallthru
        _
      %p114 = scmp.lt.s32.totalorder %s15, 2
      // Predicated region
      $region17: #{tpu_custom_call.1} parent=5 // pred_check
        %p115 = pneg %p114
      $region18: #{tpu_custom_call.1} parent=5 // pred_check_branch
        %117 = sbr.rel (%p115) target = $region20
      $region19: #{tpu_custom_call.1} parent=5 // pred_region
        // Predicated region
        $region21: #{tpu_custom_call.1} parent=19 // pred_check
          %p118 = pneg %p56
        $region22: #{tpu_custom_call.1} parent=19 // pred_check_branch
          %120 = sbr.rel (%p118) target = $region24
        $region23: #{tpu_custom_call.1} parent=19 // pred_region
          %s121 = sand.u32 %s46, 1
          %s122 = scalar_lea.sflag [#allocation6], %s121
          %s123 = sand.u32 %s46, 1
          %s124 = smul.addr %s123, 48
          %s125 = scalar_lea.vmem [#allocation5], %s124
          %s126 = smul.u32 2, %s15
          %s128 = ssub.s32 768, 768
          %129 = vsyncadd %s122, %s128
          %s130 = smul.addr %s126, 64
          %s131 = scalar_lea.hbm %s1, %s130
          %s132 = sshll.u32 %s125, 4
          %s133 = int_to_ptr.vmem [resolvable:$true] %s132
          %138 = dma.hbm_to_vmem [thread:$0]  %s131, 768, %s133, %s122, 256, 128, 8
        $region24: #{tpu_custom_call.1} parent=19 // pred_fallthru
          _
      $region20: #{tpu_custom_call.1} parent=5 // pred_fallthru
        _
      %p139 = scmp.le.s32.totalorder 1, %s15
      %p140 = scmp.lt.s32.totalorder %s15, 3
      %p141 = pnand %p139, %p140
      %p142 = pneg %p141
      // Predicated region
      $region25: #{tpu_custom_call.1} parent=5 // pred_check
        _
      $region26: #{tpu_custom_call.1} parent=5 // pred_check_branch
        %144 = sbr.rel (%p141) target = $region28
      $region27: #{tpu_custom_call.1} parent=5 // pred_region
        %s145 = ssub.s32 %s15, 1
        // Predicated region
        $region29: #{tpu_custom_call.1} parent=27 // pred_check
          %p146 = pneg %p36
        $region30: #{tpu_custom_call.1} parent=27 // pred_check_branch
          %148 = sbr.rel (%p146) target = $region32
        $region31: #{tpu_custom_call.1} parent=27 // pred_region
          %149 = dma.done [#allocation3], 64
        $region32: #{tpu_custom_call.1} parent=27 // pred_fallthru
          _
        %s150 = sand.u32 %s49, 1
        %s151 = scalar_lea.sflag [#allocation6], %s150
        %s152 = sand.u32 %s49, 1
        %s153 = smul.addr %s152, 48
        %s154 = scalar_lea.vmem [#allocation5], %s153
        // Predicated region
        $region33: #{tpu_custom_call.1} parent=27 // pred_check
          %p155 = pneg %p62
        $region34: #{tpu_custom_call.1} parent=27 // pred_check_branch
          %157 = sbr.rel (%p155) target = $region36
        $region35: #{tpu_custom_call.1} parent=27 // pred_region
          %158 = dma.done %s151, 768
        $region36: #{tpu_custom_call.1} parent=27 // pred_fallthru
          _
        %p159 = pneg %p36
        %p160 = pneg %p33
        %s161 = sand.u32 %s49, 1
        %s162 = scalar_lea.sflag [#allocation6], %s161
        %s163 = sand.u32 %s49, 1
        %s164 = smul.addr %s163, 48
        %s165 = scalar_lea.vmem [#allocation5], %s164
        %p166 = pneg %p62
        %p167 = pneg %p59
        %p168 = pneg %p88
        %p169 = pneg %p85
        %s170 = sand.u32 %s75, 1
        %s171 = scalar_lea.sflag [#allocation4], %s170
        %s172 = sand.u32 %s75, 1
        %s173 = smul.addr %s172, 8
        %s174 = scalar_lea.vmem [#allocation7], %s173
        %s175 = smul.u32 2, %s20
        %v177 = vld [vmem:[#allocation2] sm:$0xf]
        %v178 = vld [vmem:[%s154] sm:$0xf]
        %v179 = vld [vmem:[%s154 + $0x8] sm:$0xf]
        %v180 = vld [vmem:[%s154 + $0x10] sm:$0xf]
        %v181 = vld [vmem:[%s154 + $0x18] sm:$0xf]
        %v182 = vld [vmem:[%s154 + $0x20] sm:$0xf]
        %v183 = vld [vmem:[%s154 + $0x28] sm:$0xf]
        %v190 = vunpack.c.l.b16 %v178
        %v191 = vunpack.c.l.b16 %v179
        %v192 = vunpack.c.l.b16 %v180
        %v193 = vunpack.c.l.b16 %v181
        %v194 = vunpack.c.l.b16 %v182
        %v195 = vunpack.c.l.b16 %v183
        %v196 = vpack.c.b16 %v191, %v190
        %v197 = vpack.c.b16 %v193, %v192
        %v198 = vpack.c.b16 %v195, %v194
        %vm202 = vcmask 392192
        %v204 = vsel %vm202, %v177, 0
        %206 = vmatprep.subr.bf16.mxu0 0
        %207 = vmatpush1.bf16.msra.mxu0 0
        %208 = vmatprep.subr.bf16.mxu0 0
        %209 = vmatpush1.bf16.msra.mxu0 0
        %210 = vmatprep.subr.bf16.mxu0 0
        %211 = vmatpush1.bf16.msra.mxu0 0
        %212 = vmatprep.subr.bf16.mxu0 0
        %213 = vmatpush1.bf16.msra.mxu0 0
        %214 = vmatprep.subr.bf16.mxu0 0
        %215 = vmatpush1.bf16.msra.mxu0 0
        %216 = vmatprep.subr.bf16.mxu0 0
        %217 = vmatpush1.bf16.msra.mxu0 %v198
        %218 = vmatprep.subr.bf16.mxu0 0
        %219 = vmatpush1.bf16.msra.mxu0 %v197
        %220 = vmatprep.subr.bf16.mxu0 0
        %221 = vmatpush1.bf16.msra.mxu0 %v196
        %222 = vmatprep.subr.bf16.mxu0 0
        %223 = vmatpush2.bf16.msra.mxu0 0
        %224 = vmatprep.subr.bf16.mxu0 0
        %225 = vmatpush2.bf16.msra.mxu0 0
        %226 = vmatprep.subr.bf16.mxu0 0
        %227 = vmatpush2.bf16.msra.mxu0 0
        %228 = vmatprep.subr.bf16.mxu0 0
        %229 = vmatpush2.bf16.msra.mxu0 0
        %230 = vmatprep.subr.bf16.mxu0 0
        %231 = vmatpush2.bf16.msra.mxu0 0
        %232 = vmatprep.subr.bf16.mxu0 0
        %233 = vmatpush2.bf16.msra.mxu0 0
        %234 = vmatprep.subr.bf16.mxu0 0
        %235 = vmatpush2.bf16.msra.mxu0 0
        %236 = vmatprep.subr.bf16.mxu0 0
        %237 = vmatpush2.bf16.msra.mxu0 0
        %238 = vmatprep.mubr.bf16.mxu0 0
        %239 = vmatmul.mubr.bf16.gmra.mxu0 %v204
        %v240 = vpop.f32.mrf.mxu0
        %v241 = vadd.f32 0.0, %v240
        %v242 = vpop.f32.mrf.mxu0
        %v243 = vpop.f32.mrf.mxu0
        %v244 = vpop.f32.mrf.mxu0
        %245 = vdwg.mxu0
        %v246 = vmul.f32 %v241, %v241
        %v247 = vadd.f32 %v246, 0.0
        %v248 = vld [vmem:[%s154 + $0x4] sm:$0xf]
        %v249 = vld [vmem:[%s154 + $0xc] sm:$0xf]
        %v250 = vld [vmem:[%s154 + $0x14] sm:$0xf]
        %v251 = vld [vmem:[%s154 + $0x1c] sm:$0xf]
        %v252 = vld [vmem:[%s154 + $0x24] sm:$0xf]
        %v253 = vld [vmem:[%s154 + $0x2c] sm:$0xf]
        %v260 = vunpack.c.l.b16 %v248
        %v261 = vunpack.c.l.b16 %v249
        %v262 = vunpack.c.l.b16 %v250
        %v263 = vunpack.c.l.b16 %v251
        %v264 = vunpack.c.l.b16 %v252
        %v265 = vunpack.c.l.b16 %v253
        %v266 = vpack.c.b16 %v261, %v260
        %v267 = vpack.c.b16 %v263, %v262
        %v268 = vpack.c.b16 %v265, %v264
        %272 = vmatprep.subr.bf16.mxu0 0
        %273 = vmatpush1.bf16.msra.mxu0 0
        %274 = vmatprep.subr.bf16.mxu0 0
        %275 = vmatpush1.bf16.msra.mxu0 0
        %276 = vmatprep.subr.bf16.mxu0 0
        %277 = vmatpush1.bf16.msra.mxu0 0
        %278 = vmatprep.subr.bf16.mxu0 0
        %279 = vmatpush1.bf16.msra.mxu0 0
        %280 = vmatprep.subr.bf16.mxu0 0
        %281 = vmatpush1.bf16.msra.mxu0 0
        %282 = vmatprep.subr.bf16.mxu0 0
        %283 = vmatpush1.bf16.msra.mxu0 %v268
        %284 = vmatprep.subr.bf16.mxu0 0
        %285 = vmatpush1.bf16.msra.mxu0 %v267
        %286 = vmatprep.subr.bf16.mxu0 0
        %287 = vmatpush1.bf16.msra.mxu0 %v266
        %288 = vmatprep.subr.bf16.mxu0 0
        %289 = vmatpush2.bf16.msra.mxu0 0
        %290 = vmatprep.subr.bf16.mxu0 0
        %291 = vmatpush2.bf16.msra.mxu0 0
        %292 = vmatprep.subr.bf16.mxu0 0
        %293 = vmatpush2.bf16.msra.mxu0 0
        %294 = vmatprep.subr.bf16.mxu0 0
        %295 = vmatpush2.bf16.msra.mxu0 0
        %296 = vmatprep.subr.bf16.mxu0 0
        %297 = vmatpush2.bf16.msra.mxu0 0
        %298 = vmatprep.subr.bf16.mxu0 0
        %299 = vmatpush2.bf16.msra.mxu0 0
        %300 = vmatprep.subr.bf16.mxu0 0
        %301 = vmatpush2.bf16.msra.mxu0 0
        %302 = vmatprep.subr.bf16.mxu0 0
        %303 = vmatpush2.bf16.msra.mxu0 0
        %304 = vmatprep.mubr.bf16.mxu0 0
        %305 = vmatmul.mubr.bf16.gmra.mxu0 %v204
        %v306 = vpop.f32.mrf.mxu0
        %v307 = vadd.f32 0.0, %v306
        %v308 = vpop.f32.mrf.mxu0
        %v309 = vpop.f32.mrf.mxu0
        %v310 = vpop.f32.mrf.mxu0
        %311 = vdwg.mxu0
        %v312 = vmul.f32 %v307, %v307
        %v313 = vadd.f32 %v247, %v312
        %314 = vst [vmem:[%s174] sm:$0xff] %v313
        %s315 = sand.u32 %s75, 1
        %s316 = scalar_lea.sflag [#allocation4], %s315
        %s317 = sand.u32 %s75, 1
        %s318 = smul.addr %s317, 8
        %s319 = scalar_lea.vmem [#allocation7], %s318
        // Predicated region
        $region37: #{tpu_custom_call.1} parent=27 // pred_check
          %p320 = pneg %p85
        $region38: #{tpu_custom_call.1} parent=27 // pred_check_branch
          %322 = sbr.rel (%p320) target = $region40
        $region39: #{tpu_custom_call.1} parent=27 // pred_region
          %s324 = ssub.s32 128, 128
          %325 = vsyncadd %s316, %s324
          %s326 = smul.addr %s20, 128
          %s327 = scalar_lea.hbm %s2, %s326
          %s329 = sshll.u32 %s319, 4
          %s330 = int_to_ptr.vmem [resolvable:$true] %s329
          %332 = dma.vmem_to_hbm [thread:$0]  %s330, 128, %s327, %s316
        $region40: #{tpu_custom_call.1} parent=27 // pred_fallthru
          _
      $region28: #{tpu_custom_call.1} parent=5 // pred_fallthru
        _
      %p333 = scmp.le.s32.totalorder 2, %s15
      // Predicated region
      $region41: #{tpu_custom_call.1} parent=5 // pred_check
        %p334 = pneg %p333
      $region42: #{tpu_custom_call.1} parent=5 // pred_check_branch
        %336 = sbr.rel (%p334) target = $region44
      $region43: #{tpu_custom_call.1} parent=5 // pred_region
        %s337 = ssub.s32 %s15, 2
        // Predicated region
        $region45: #{tpu_custom_call.1} parent=43 // pred_check
          %p338 = pneg %p91
        $region46: #{tpu_custom_call.1} parent=43 // pred_check_branch
          %340 = sbr.rel (%p338) target = $region48
        $region47: #{tpu_custom_call.1} parent=43 // pred_region
          %s341 = sand.u32 %s76, 1
          %s342 = scalar_lea.sflag [#allocation4], %s341
          %s343 = sand.u32 %s76, 1
          %s344 = smul.addr %s343, 8
          %s345 = scalar_lea.vmem [#allocation7], %s344
          %346 = dma.done %s342, 128
        $region48: #{tpu_custom_call.1} parent=43 // pred_fallthru
          _
      $region44: #{tpu_custom_call.1} parent=5 // pred_fallthru
        _
    $region6: #{tpu_custom_call.1} parent=1 // loop_footer
      %s19 = sadd.s32 1, %s15
    $region7: #{tpu_custom_call.1} parent=1 // loop_footer_branch
      %14 = sbr.rel target = $region3
    $region8: #{tpu_custom_call.1} parent=1 // loop_exit
      _
    %347 = vsyncpa [#allocation3], 1
    %s348 = scalar_lea.sflag [#allocation3], 1
    %349 = vsyncpa %s348, 1
    %350 = vsyncpa [#allocation6], 1
    %s351 = scalar_lea.sflag [#allocation6], 1
    %352 = vsyncpa %s351, 1
    %353 = vsyncpa [#allocation4], 1
    %s354 = scalar_lea.sflag [#allocation4], 1
    %355 = vsyncpa %s354, 1

</llo_original>
